<compile_context>
chip_gen: v5e
topology: v5e:2x2
jax: 0.10.0
libtpu: 0.0.40
codegen_flags: <defaults>
</compile_context>

<pallas_src>
import functools

import jax
import jax.numpy as jnp
from jax.experimental import pallas as pl
from jax.experimental.pallas import tpu as pltpu

NEG_SLOPE = 0.01  # torch.nn.LeakyReLU default


def _pick_o_tile(n_out, hidden, dtype_bytes=4, vmem_budget=8 * 1024 * 1024):
    """Pick an output-channel tile To (divisor of O) whose double-buffered U2
    column block (H, To*H) fits a conservative VMEM budget and keeps the U2
    block lane dim a multiple of 128 when it is not the full array."""
    per_channel = 2 * hidden * hidden * dtype_bytes  # 2x: BlockSpec double-buffering

    def ok(t):
        return n_out % t == 0 and (t == n_out or (t * hidden) % 128 == 0)

    to = max(1, min(n_out, vmem_budget // per_channel))
    while to > 1 and not ok(to):
        to -= 1
    if not ok(to):
        to = n_out  # small-O / odd-H fallback: keep U2 fully resident
    return to


def bilinear_kernel(x_ref, wab_ref, bab_ref, u2_ref, o_ref,
                    a_scr, bt_scr, *, o_tile, hidden, compute_dtype):
    # x_ref: (1, S, I)   wab: (I, 2H)   bab: (1, 2H)
    # u2_ref: (H, To*H) column block of U2   o_ref: (1, To, S, S)
    # a_scr: (S, H) f32  bt_scr: (H, S) f32   (persist across the o-tile axis)
    ot = pl.program_id(1)

    @pl.when(ot == 0)
    def _():
        # Activation + fused projections computed ONCE per batch (not per o-tile).
        x = x_ref[0].astype(jnp.float32)                 # (S, I)
        act = jnp.where(x >= 0, x, NEG_SLOPE * x)        # LeakyReLU on the VPU
        ab = jnp.dot(act.astype(compute_dtype),
                     wab_ref[...].astype(compute_dtype),
                     preferred_element_type=jnp.float32) # (S, 2H) f32 acc
        ab = ab + bab_ref[...].astype(jnp.float32)
        a_scr[...] = ab[:, :hidden]                      # (S, H)
        bt_scr[...] = ab[:, hidden:].T                   # (H, S): one hoisted transpose

    # One wide MXU matmul replaces the per-channel a @ U[o] dots:
    #   C[m, o*H + j] = sum_i a[m, i] * U[o, i, j]
    c = jnp.dot(a_scr[...].astype(compute_dtype), u2_ref[...].astype(compute_dtype),
                preferred_element_type=jnp.float32)      # (S, To*H) f32

    bt = bt_scr[...].astype(compute_dtype)               # (H, S)
    # Bounded unrolled loop over the To channels of THIS tile only (To is capped by
    # the VMEM-aware tiler, large O lives on the grid axis). Each iteration is a
    # static slice + one (S,H)@(H,S) MXU dot stored immediately -> tiny live ranges.
    for o in range(o_tile):
        c_o = c[:, o * hidden:(o + 1) * hidden].astype(compute_dtype)     # (S, H)
        o_ref[0, o] = jnp.dot(c_o, bt,
                              preferred_element_type=jnp.float32).astype(o_ref.dtype)


@functools.partial(jax.jit, static_argnames=("compute_dtype", "o_tile"))
def _bilinear_pallas(embedding, wa, ba, wb, bb, u, *,
                     compute_dtype=jnp.float32, o_tile=None):
    B, S, I = embedding.shape
    H = wa.shape[1]
    O = u.shape[0]
    To = o_tile if o_tile is not None else _pick_o_tile(O, H)
    assert O % To == 0, (O, To)

    # Weight preprocessing (done once, outside the kernel):
    #   Wab = [Wa | Wb]  -> a single fused projection matmul in-kernel.
    #   U2[i, o*H + j] = U[o, i, j]  -> enables the single wide matmul a @ U2.
    wab = jnp.concatenate([wa, wb], axis=1)                    # (I, 2H)
    bab = jnp.concatenate([ba, bb], axis=0).reshape(1, 2 * H)  # (1, 2H)
    u2 = jnp.transpose(u, (1, 0, 2)).reshape(H, O * H)

    kernel = functools.partial(bilinear_kernel, o_tile=To, hidden=H,
                               compute_dtype=compute_dtype)

    out_omn = pl.pallas_call(
        kernel,
        out_shape=jax.ShapeDtypeStruct((B, O, S, S), jnp.float32),
        grid=(B, O // To),
        in_specs=[
            pl.BlockSpec((1, S, I), lambda b, ot: (b, 0, 0)),      # embedding tile
            pl.BlockSpec((I, 2 * H), lambda b, ot: (0, 0)),        # fused Wa|Wb (resident)
            pl.BlockSpec((1, 2 * H), lambda b, ot: (0, 0)),        # fused ba|bb
            pl.BlockSpec((H, To * H), lambda b, ot: (0, ot)),      # U2 column tile
        ],
        out_specs=pl.BlockSpec((1, To, S, S), lambda b, ot: (b, ot, 0, 0)),
        scratch_shapes=[
            pltpu.VMEM((S, H), jnp.float32),   # a   (per-batch cache)
            pltpu.VMEM((H, S), jnp.float32),   # b^T (per-batch cache)
        ],
        compiler_params=pltpu.CompilerParams(
            # batch axis -> megacore parallel; o-tile axis sequential (scratch reuse).
            dimension_semantics=("parallel", "arbitrary")),
    )(embedding, wab, bab, u2)

    # Glue: (B, O, M, N) -> (B, M, N, O) to match the PyTorch module's documented
    # output layout. At production sizes prefer consuming (B,O,M,N) directly.
    return jnp.transpose(out_omn, (0, 2, 3, 1))


def bilinear_reference(embedding, wa, ba, wb, bb, u):
    act = jnp.where(embedding >= 0, embedding, NEG_SLOPE * embedding)
    a = act @ wa + ba
    b = act @ wb + bb
    return jnp.einsum('bmi,oij,bnj->bmno', a, u, b)


def bilinear_forward(embedding, wa, ba, wb, bb, u, *,
                     compute_dtype=jnp.float32, o_tile=None, use_pallas=None):
    """Forward pass. `use_pallas=None` auto-dispatches: tiny problems go to plain
    XLA fusion (the Pallas kernel would be pure launch/pipeline overhead there)."""
    B, S, I = embedding.shape
    H = wa.shape[1]
    if use_pallas is None:
        use_pallas = (S >= 128 and H >= 128)
    if not use_pallas:
        return bilinear_reference(embedding, wa, ba, wb, bb, u)
    return _bilinear_pallas(embedding, wa, ba, wb, bb, u,
                            compute_dtype=compute_dtype, o_tile=o_tile)


if __name__ == "__main__":
    # Config: input_size = hidden_size = 32, output_size = 16
    B, S, I = 2, 8, 32
    H, O = 32, 16

    key = jax.random.PRNGKey(0)
    k_x, k_wa, k_ba, k_wb, k_bb, k_u = jax.random.split(key, 6)

    embedding = jax.random.normal(k_x, (B, S, I), dtype=jnp.float32)
    # nn.Linear-style params (stored as (in, out) so the kernel does act @ W + b).
    wa = jax.random.normal(k_wa, (I, H), dtype=jnp.float32) * (1.0 / jnp.sqrt(I))
    ba = jax.random.normal(k_ba, (H,), dtype=jnp.float32) * 0.01
    wb = jax.random.normal(k_wb, (I, H), dtype=jnp.float32) * (1.0 / jnp.sqrt(I))
    bb = jax.random.normal(k_bb, (H,), dtype=jnp.float32) * 0.01
    # Bilinear map U[o, i, j].
    u = jax.random.normal(k_u, (O, H, H), dtype=jnp.float32) * (1.0 / H)

    # Force the Pallas path (the auto-gate would route this tiny config to XLA).
    out = bilinear_forward(embedding, wa, ba, wb, bb, u, use_pallas=True)
    out = jax.block_until_ready(out)

    ref = bilinear_reference(embedding, wa, ba, wb, bb, u)
    assert out.shape == (B, S, S, O), out.shape
    assert jnp.allclose(out, ref, atol=1e-4, rtol=1e-4), (
        float(jnp.max(jnp.abs(out - ref))))
    print("KERNEL_OK")
</pallas_src>

<mosaic_0001>
module attributes {stable_mosaic.version = 11 : i64} {
  func.func @bilinear_kernel(%arg0: i32, %arg1: i32, %arg2: memref<1x8x32xf32, #tpu.memory_space<vmem>>, %arg3: memref<32x64xf32, #tpu.memory_space<vmem>>, %arg4: memref<1x64xf32, #tpu.memory_space<vmem>>, %arg5: memref<32x512xf32, #tpu.memory_space<vmem>>, %arg6: memref<1x16x8x8xf32, #tpu.memory_space<vmem>>, %arg7: memref<8x32xf32, #tpu.memory_space<vmem>>, %arg8: memref<32x8xf32, #tpu.memory_space<vmem>>) attributes {dimension_semantics = [#tpu.dimension_semantics<parallel>, #tpu.dimension_semantics<arbitrary>], iteration_bounds = array<i64: 2, 1>, scalar_prefetch = 0 : i64, scratch_operands = 2 : i64, tpu.core_type = #tpu.core_type<tc>, window_params = [{transform_indices = @transform_0, window_bounds = array<i64: 1, 8, 32>}, {pipeline_mode = #tpu.pipeline_mode<synchronous>, transform_indices = @transform_1, window_bounds = array<i64: 32, 64>}, {pipeline_mode = #tpu.pipeline_mode<synchronous>, transform_indices = @transform_2, window_bounds = array<i64: 1, 64>}, {transform_indices = @transform_3, window_bounds = array<i64: 32, 512>}, {transform_indices = @transform_4, window_bounds = array<i64: 1, 16, 8, 8>}]} {
    %c0_i32 = arith.constant 0 : i32
    %0 = arith.cmpi eq, %arg1, %c0_i32 : i32
    %1 = arith.extui %0 : i1 to i32
    %c0_i32_0 = arith.constant 0 : i32
    %2 = arith.cmpi ne, %1, %c0_i32_0 : i32
    scf.if %2 {
      %c0_71 = arith.constant 0 : index
      %c0_72 = arith.constant 0 : index
      %c0_73 = arith.constant 0 : index
      %87 = vector.load %arg2[%c0_71, %c0_72, %c0_73] : memref<1x8x32xf32, #tpu.memory_space<vmem>>, vector<1x8x32xf32>
      %88 = vector.shape_cast %87 : vector<1x8x32xf32> to vector<8x32xf32>
      %cst_74 = arith.constant 0.000000e+00 : f32
      %89 = vector.broadcast %cst_74 : f32 to vector<8x32xf32>
      %90 = arith.cmpf oge, %88, %89 : vector<8x32xf32>
      %cst_75 = arith.constant 0.00999999977 : f32
      %91 = vector.broadcast %cst_75 : f32 to vector<8x32xf32>
      %92 = arith.mulf %91, %88 : vector<8x32xf32>
      %93 = arith.select %90, %88, %92 : vector<8x32xi1>, vector<8x32xf32>
      %c0_76 = arith.constant 0 : index
      %c0_77 = arith.constant 0 : index
      %94 = vector.load %arg3[%c0_76, %c0_77] : memref<32x64xf32, #tpu.memory_space<vmem>>, vector<32x64xf32>
      %cst_78 = arith.constant dense<0.000000e+00> : vector<8x64xf32>
      %95 = tpu.matmul %93, %94, %cst_78 {dimension_numbers = #tpu.dot_dimension_numbers<[1], [0], [0], [1], [0, 0, 1, 1], [], []>} : vector<8x32xf32>, vector<32x64xf32>, vector<8x64xf32> -> vector<8x64xf32>
      %c0_79 = arith.constant 0 : index
      %c0_80 = arith.constant 0 : index
      %96 = vector.load %arg4[%c0_79, %c0_80] : memref<1x64xf32, #tpu.memory_space<vmem>>, vector<1x64xf32>
      %97 = vector.broadcast %96 : vector<1x64xf32> to vector<8x64xf32>
      %98 = arith.addf %95, %97 : vector<8x64xf32>
      %99 = vector.extract_strided_slice %98 {offsets = [0, 0], sizes = [8, 32], strides = [1, 1]} : vector<8x64xf32> to vector<8x32xf32>
      %c0_81 = arith.constant 0 : index
      %c0_82 = arith.constant 0 : index
      %100 = vector.load %arg7[%c0_81, %c0_82] : memref<8x32xf32, #tpu.memory_space<vmem>>, vector<8x32xf32>
      tpu.vector_store %arg7[%c0_81, %c0_82], %99 {strides = array<i32>} : memref<8x32xf32, #tpu.memory_space<vmem>>, vector<8x32xf32>,
      %101 = vector.extract_strided_slice %98 {offsets = [0, 32], sizes = [8, 32], strides = [1, 1]} : vector<8x64xf32> to vector<8x32xf32>
      %102 = tpu.transpose %101, [1, 0] : vector<8x32xf32> -> vector<32x8xf32>
      %c0_83 = arith.constant 0 : index
      %c0_84 = arith.constant 0 : index
      %103 = vector.load %arg8[%c0_83, %c0_84] : memref<32x8xf32, #tpu.memory_space<vmem>>, vector<32x8xf32>
      tpu.vector_store %arg8[%c0_83, %c0_84], %102 {strides = array<i32>} : memref<32x8xf32, #tpu.memory_space<vmem>>, vector<32x8xf32>,
    } else {
    }
    %c0 = arith.constant 0 : index
    %c0_1 = arith.constant 0 : index
    %3 = vector.load %arg7[%c0, %c0_1] : memref<8x32xf32, #tpu.memory_space<vmem>>, vector<8x32xf32>
    %c0_2 = arith.constant 0 : index
    %c0_3 = arith.constant 0 : index
    %4 = vector.load %arg5[%c0_2, %c0_3] : memref<32x512xf32, #tpu.memory_space<vmem>>, vector<32x512xf32>
    %cst = arith.constant dense<0.000000e+00> : vector<8x512xf32>
    %5 = tpu.matmul %3, %4, %cst {dimension_numbers = #tpu.dot_dimension_numbers<[1], [0], [0], [1], [0, 0, 1, 1], [], []>} : vector<8x32xf32>, vector<32x512xf32>, vector<8x512xf32> -> vector<8x512xf32>
    %c0_4 = arith.constant 0 : index
    %c0_5 = arith.constant 0 : index
    %6 = vector.load %arg8[%c0_4, %c0_5] : memref<32x8xf32, #tpu.memory_space<vmem>>, vector<32x8xf32>
    %7 = vector.extract_strided_slice %5 {offsets = [0, 0], sizes = [8, 32], strides = [1, 1]} : vector<8x512xf32> to vector<8x32xf32>
    %cst_6 = arith.constant dense<0.000000e+00> : vector<8x8xf32>
    %8 = tpu.matmul %7, %6, %cst_6 {dimension_numbers = #tpu.dot_dimension_numbers<[1], [0], [0], [1], [0, 0, 1, 1], [], []>} : vector<8x32xf32>, vector<32x8xf32>, vector<8x8xf32> -> vector<8x8xf32>
    %c0_7 = arith.constant 0 : index
    %c0_8 = arith.constant 0 : index
    %c0_9 = arith.constant 0 : index
    %c0_10 = arith.constant 0 : index
    %9 = vector.load %arg6[%c0_7, %c0_8, %c0_9, %c0_10] : memref<1x16x8x8xf32, #tpu.memory_space<vmem>>, vector<1x1x8x8xf32>
    %10 = vector.shape_cast %9 : vector<1x1x8x8xf32> to vector<8x8xf32>
    %11 = vector.shape_cast %8 : vector<8x8xf32> to vector<1x1x8x8xf32>
    tpu.vector_store %arg6[%c0_7, %c0_8, %c0_9, %c0_10], %11 {strides = array<i32>} : memref<1x16x8x8xf32, #tpu.memory_space<vmem>>, vector<1x1x8x8xf32>,
    %12 = vector.extract_strided_slice %5 {offsets = [0, 32], sizes = [8, 32], strides = [1, 1]} : vector<8x512xf32> to vector<8x32xf32>
    %cst_11 = arith.constant dense<0.000000e+00> : vector<8x8xf32>
    %13 = tpu.matmul %12, %6, %cst_11 {dimension_numbers = #tpu.dot_dimension_numbers<[1], [0], [0], [1], [0, 0, 1, 1], [], []>} : vector<8x32xf32>, vector<32x8xf32>, vector<8x8xf32> -> vector<8x8xf32>
    %c0_12 = arith.constant 0 : index
    %c1 = arith.constant 1 : index
    %c0_13 = arith.constant 0 : index
    %c0_14 = arith.constant 0 : index
    %14 = vector.load %arg6[%c0_12, %c1, %c0_13, %c0_14] : memref<1x16x8x8xf32, #tpu.memory_space<vmem>>, vector<1x1x8x8xf32>
    %15 = vector.shape_cast %14 : vector<1x1x8x8xf32> to vector<8x8xf32>
    %16 = vector.shape_cast %13 : vector<8x8xf32> to vector<1x1x8x8xf32>
    tpu.vector_store %arg6[%c0_12, %c1, %c0_13, %c0_14], %16 {strides = array<i32>} : memref<1x16x8x8xf32, #tpu.memory_space<vmem>>, vector<1x1x8x8xf32>,
    %17 = vector.extract_strided_slice %5 {offsets = [0, 64], sizes = [8, 32], strides = [1, 1]} : vector<8x512xf32> to vector<8x32xf32>
    %cst_15 = arith.constant dense<0.000000e+00> : vector<8x8xf32>
    %18 = tpu.matmul %17, %6, %cst_15 {dimension_numbers = #tpu.dot_dimension_numbers<[1], [0], [0], [1], [0, 0, 1, 1], [], []>} : vector<8x32xf32>, vector<32x8xf32>, vector<8x8xf32> -> vector<8x8xf32>
    %c0_16 = arith.constant 0 : index
    %c2 = arith.constant 2 : index
    %c0_17 = arith.constant 0 : index
    %c0_18 = arith.constant 0 : index
    %19 = vector.load %arg6[%c0_16, %c2, %c0_17, %c0_18] : memref<1x16x8x8xf32, #tpu.memory_space<vmem>>, vector<1x1x8x8xf32>
    %20 = vector.shape_cast %19 : vector<1x1x8x8xf32> to vector<8x8xf32>
    %21 = vector.shape_cast %18 : vector<8x8xf32> to vector<1x1x8x8xf32>
    tpu.vector_store %arg6[%c0_16, %c2, %c0_17, %c0_18], %21 {strides = array<i32>} : memref<1x16x8x8xf32, #tpu.memory_space<vmem>>, vector<1x1x8x8xf32>,
    %22 = vector.extract_strided_slice %5 {offsets = [0, 96], sizes = [8, 32], strides = [1, 1]} : vector<8x512xf32> to vector<8x32xf32>
    %cst_19 = arith.constant dense<0.000000e+00> : vector<8x8xf32>
    %23 = tpu.matmul %22, %6, %cst_19 {dimension_numbers = #tpu.dot_dimension_numbers<[1], [0], [0], [1], [0, 0, 1, 1], [], []>} : vector<8x32xf32>, vector<32x8xf32>, vector<8x8xf32> -> vector<8x8xf32>
    %c0_20 = arith.constant 0 : index
    %c3 = arith.constant 3 : index
    %c0_21 = arith.constant 0 : index
    %c0_22 = arith.constant 0 : index
    %24 = vector.load %arg6[%c0_20, %c3, %c0_21, %c0_22] : memref<1x16x8x8xf32, #tpu.memory_space<vmem>>, vector<1x1x8x8xf32>
    %25 = vector.shape_cast %24 : vector<1x1x8x8xf32> to vector<8x8xf32>
    %26 = vector.shape_cast %23 : vector<8x8xf32> to vector<1x1x8x8xf32>
    tpu.vector_store %arg6[%c0_20, %c3, %c0_21, %c0_22], %26 {strides = array<i32>} : memref<1x16x8x8xf32, #tpu.memory_space<vmem>>, vector<1x1x8x8xf32>,
    %27 = vector.extract_strided_slice %5 {offsets = [0, 128], sizes = [8, 32], strides = [1, 1]} : vector<8x512xf32> to vector<8x32xf32>
    %cst_23 = arith.constant dense<0.000000e+00> : vector<8x8xf32>
    %28 = tpu.matmul %27, %6, %cst_23 {dimension_numbers = #tpu.dot_dimension_numbers<[1], [0], [0], [1], [0, 0, 1, 1], [], []>} : vector<8x32xf32>, vector<32x8xf32>, vector<8x8xf32> -> vector<8x8xf32>
    %c0_24 = arith.constant 0 : index
    %c4 = arith.constant 4 : index
    %c0_25 = arith.constant 0 : index
    %c0_26 = arith.constant 0 : index
    %29 = vector.load %arg6[%c0_24, %c4, %c0_25, %c0_26] : memref<1x16x8x8xf32, #tpu.memory_space<vmem>>, vector<1x1x8x8xf32>
    %30 = vector.shape_cast %29 : vector<1x1x8x8xf32> to vector<8x8xf32>
    %31 = vector.shape_cast %28 : vector<8x8xf32> to vector<1x1x8x8xf32>
    tpu.vector_store %arg6[%c0_24, %c4, %c0_25, %c0_26], %31 {strides = array<i32>} : memref<1x16x8x8xf32, #tpu.memory_space<vmem>>, vector<1x1x8x8xf32>,
    %32 = vector.extract_strided_slice %5 {offsets = [0, 160], sizes = [8, 32], strides = [1, 1]} : vector<8x512xf32> to vector<8x32xf32>
    %cst_27 = arith.constant dense<0.000000e+00> : vector<8x8xf32>
    %33 = tpu.matmul %32, %6, %cst_27 {dimension_numbers = #tpu.dot_dimension_numbers<[1], [0], [0], [1], [0, 0, 1, 1], [], []>} : vector<8x32xf32>, vector<32x8xf32>, vector<8x8xf32> -> vector<8x8xf32>
    %c0_28 = arith.constant 0 : index
    %c5 = arith.constant 5 : index
    %c0_29 = arith.constant 0 : index
    %c0_30 = arith.constant 0 : index
    %34 = vector.load %arg6[%c0_28, %c5, %c0_29, %c0_30] : memref<1x16x8x8xf32, #tpu.memory_space<vmem>>, vector<1x1x8x8xf32>
    %35 = vector.shape_cast %34 : vector<1x1x8x8xf32> to vector<8x8xf32>
    %36 = vector.shape_cast %33 : vector<8x8xf32> to vector<1x1x8x8xf32>
    tpu.vector_store %arg6[%c0_28, %c5, %c0_29, %c0_30], %36 {strides = array<i32>} : memref<1x16x8x8xf32, #tpu.memory_space<vmem>>, vector<1x1x8x8xf32>,
    %37 = vector.extract_strided_slice %5 {offsets = [0, 192], sizes = [8, 32], strides = [1, 1]} : vector<8x512xf32> to vector<8x32xf32>
    %cst_31 = arith.constant dense<0.000000e+00> : vector<8x8xf32>
    %38 = tpu.matmul %37, %6, %cst_31 {dimension_numbers = #tpu.dot_dimension_numbers<[1], [0], [0], [1], [0, 0, 1, 1], [], []>} : vector<8x32xf32>, vector<32x8xf32>, vector<8x8xf32> -> vector<8x8xf32>
    %c0_32 = arith.constant 0 : index
    %c6 = arith.constant 6 : index
    %c0_33 = arith.constant 0 : index
    %c0_34 = arith.constant 0 : index
    %39 = vector.load %arg6[%c0_32, %c6, %c0_33, %c0_34] : memref<1x16x8x8xf32, #tpu.memory_space<vmem>>, vector<1x1x8x8xf32>
    %40 = vector.shape_cast %39 : vector<1x1x8x8xf32> to vector<8x8xf32>
    %41 = vector.shape_cast %38 : vector<8x8xf32> to vector<1x1x8x8xf32>
    tpu.vector_store %arg6[%c0_32, %c6, %c0_33, %c0_34], %41 {strides = array<i32>} : memref<1x16x8x8xf32, #tpu.memory_space<vmem>>, vector<1x1x8x8xf32>,
    %42 = vector.extract_strided_slice %5 {offsets = [0, 224], sizes = [8, 32], strides = [1, 1]} : vector<8x512xf32> to vector<8x32xf32>
    %cst_35 = arith.constant dense<0.000000e+00> : vector<8x8xf32>
    %43 = tpu.matmul %42, %6, %cst_35 {dimension_numbers = #tpu.dot_dimension_numbers<[1], [0], [0], [1], [0, 0, 1, 1], [], []>} : vector<8x32xf32>, vector<32x8xf32>, vector<8x8xf32> -> vector<8x8xf32>
    %c0_36 = arith.constant 0 : index
    %c7 = arith.constant 7 : index
    %c0_37 = arith.constant 0 : index
    %c0_38 = arith.constant 0 : index
    %44 = vector.load %arg6[%c0_36, %c7, %c0_37, %c0_38] : memref<1x16x8x8xf32, #tpu.memory_space<vmem>>, vector<1x1x8x8xf32>
    %45 = vector.shape_cast %44 : vector<1x1x8x8xf32> to vector<8x8xf32>
    %46 = vector.shape_cast %43 : vector<8x8xf32> to vector<1x1x8x8xf32>
    tpu.vector_store %arg6[%c0_36, %c7, %c0_37, %c0_38], %46 {strides = array<i32>} : memref<1x16x8x8xf32, #tpu.memory_space<vmem>>, vector<1x1x8x8xf32>,
    %47 = vector.extract_strided_slice %5 {offsets = [0, 256], sizes = [8, 32], strides = [1, 1]} : vector<8x512xf32> to vector<8x32xf32>
    %cst_39 = arith.constant dense<0.000000e+00> : vector<8x8xf32>
    %48 = tpu.matmul %47, %6, %cst_39 {dimension_numbers = #tpu.dot_dimension_numbers<[1], [0], [0], [1], [0, 0, 1, 1], [], []>} : vector<8x32xf32>, vector<32x8xf32>, vector<8x8xf32> -> vector<8x8xf32>
    %c0_40 = arith.constant 0 : index
    %c8 = arith.constant 8 : index
    %c0_41 = arith.constant 0 : index
    %c0_42 = arith.constant 0 : index
    %49 = vector.load %arg6[%c0_40, %c8, %c0_41, %c0_42] : memref<1x16x8x8xf32, #tpu.memory_space<vmem>>, vector<1x1x8x8xf32>
    %50 = vector.shape_cast %49 : vector<1x1x8x8xf32> to vector<8x8xf32>
    %51 = vector.shape_cast %48 : vector<8x8xf32> to vector<1x1x8x8xf32>
    tpu.vector_store %arg6[%c0_40, %c8, %c0_41, %c0_42], %51 {strides = array<i32>} : memref<1x16x8x8xf32, #tpu.memory_space<vmem>>, vector<1x1x8x8xf32>,
    %52 = vector.extract_strided_slice %5 {offsets = [0, 288], sizes = [8, 32], strides = [1, 1]} : vector<8x512xf32> to vector<8x32xf32>
    %cst_43 = arith.constant dense<0.000000e+00> : vector<8x8xf32>
    %53 = tpu.matmul %52, %6, %cst_43 {dimension_numbers = #tpu.dot_dimension_numbers<[1], [0], [0], [1], [0, 0, 1, 1], [], []>} : vector<8x32xf32>, vector<32x8xf32>, vector<8x8xf32> -> vector<8x8xf32>
    %c0_44 = arith.constant 0 : index
    %c9 = arith.constant 9 : index
    %c0_45 = arith.constant 0 : index
    %c0_46 = arith.constant 0 : index
    %54 = vector.load %arg6[%c0_44, %c9, %c0_45, %c0_46] : memref<1x16x8x8xf32, #tpu.memory_space<vmem>>, vector<1x1x8x8xf32>
    %55 = vector.shape_cast %54 : vector<1x1x8x8xf32> to vector<8x8xf32>
    %56 = vector.shape_cast %53 : vector<8x8xf32> to vector<1x1x8x8xf32>
    tpu.vector_store %arg6[%c0_44, %c9, %c0_45, %c0_46], %56 {strides = array<i32>} : memref<1x16x8x8xf32, #tpu.memory_space<vmem>>, vector<1x1x8x8xf32>,
    %57 = vector.extract_strided_slice %5 {offsets = [0, 320], sizes = [8, 32], strides = [1, 1]} : vector<8x512xf32> to vector<8x32xf32>
    %cst_47 = arith.constant dense<0.000000e+00> : vector<8x8xf32>
    %58 = tpu.matmul %57, %6, %cst_47 {dimension_numbers = #tpu.dot_dimension_numbers<[1], [0], [0], [1], [0, 0, 1, 1], [], []>} : vector<8x32xf32>, vector<32x8xf32>, vector<8x8xf32> -> vector<8x8xf32>
    %c0_48 = arith.constant 0 : index
    %c10 = arith.constant 10 : index
    %c0_49 = arith.constant 0 : index
    %c0_50 = arith.constant 0 : index
    %59 = vector.load %arg6[%c0_48, %c10, %c0_49, %c0_50] : memref<1x16x8x8xf32, #tpu.memory_space<vmem>>, vector<1x1x8x8xf32>
    %60 = vector.shape_cast %59 : vector<1x1x8x8xf32> to vector<8x8xf32>
    %61 = vector.shape_cast %58 : vector<8x8xf32> to vector<1x1x8x8xf32>
    tpu.vector_store %arg6[%c0_48, %c10, %c0_49, %c0_50], %61 {strides = array<i32>} : memref<1x16x8x8xf32, #tpu.memory_space<vmem>>, vector<1x1x8x8xf32>,
    %62 = vector.extract_strided_slice %5 {offsets = [0, 352], sizes = [8, 32], strides = [1, 1]} : vector<8x512xf32> to vector<8x32xf32>
    %cst_51 = arith.constant dense<0.000000e+00> : vector<8x8xf32>
    %63 = tpu.matmul %62, %6, %cst_51 {dimension_numbers = #tpu.dot_dimension_numbers<[1], [0], [0], [1], [0, 0, 1, 1], [], []>} : vector<8x32xf32>, vector<32x8xf32>, vector<8x8xf32> -> vector<8x8xf32>
    %c0_52 = arith.constant 0 : index
    %c11 = arith.constant 11 : index
    %c0_53 = arith.constant 0 : index
    %c0_54 = arith.constant 0 : index
    %64 = vector.load %arg6[%c0_52, %c11, %c0_53, %c0_54] : memref<1x16x8x8xf32, #tpu.memory_space<vmem>>, vector<1x1x8x8xf32>
    %65 = vector.shape_cast %64 : vector<1x1x8x8xf32> to vector<8x8xf32>
    %66 = vector.shape_cast %63 : vector<8x8xf32> to vector<1x1x8x8xf32>
    tpu.vector_store %arg6[%c0_52, %c11, %c0_53, %c0_54], %66 {strides = array<i32>} : memref<1x16x8x8xf32, #tpu.memory_space<vmem>>, vector<1x1x8x8xf32>,
    %67 = vector.extract_strided_slice %5 {offsets = [0, 384], sizes = [8, 32], strides = [1, 1]} : vector<8x512xf32> to vector<8x32xf32>
    %cst_55 = arith.constant dense<0.000000e+00> : vector<8x8xf32>
    %68 = tpu.matmul %67, %6, %cst_55 {dimension_numbers = #tpu.dot_dimension_numbers<[1], [0], [0], [1], [0, 0, 1, 1], [], []>} : vector<8x32xf32>, vector<32x8xf32>, vector<8x8xf32> -> vector<8x8xf32>
    %c0_56 = arith.constant 0 : index
    %c12 = arith.constant 12 : index
    %c0_57 = arith.constant 0 : index
    %c0_58 = arith.constant 0 : index
    %69 = vector.load %arg6[%c0_56, %c12, %c0_57, %c0_58] : memref<1x16x8x8xf32, #tpu.memory_space<vmem>>, vector<1x1x8x8xf32>
    %70 = vector.shape_cast %69 : vector<1x1x8x8xf32> to vector<8x8xf32>
    %71 = vector.shape_cast %68 : vector<8x8xf32> to vector<1x1x8x8xf32>
    tpu.vector_store %arg6[%c0_56, %c12, %c0_57, %c0_58], %71 {strides = array<i32>} : memref<1x16x8x8xf32, #tpu.memory_space<vmem>>, vector<1x1x8x8xf32>,
    %72 = vector.extract_strided_slice %5 {offsets = [0, 416], sizes = [8, 32], strides = [1, 1]} : vector<8x512xf32> to vector<8x32xf32>
    %cst_59 = arith.constant dense<0.000000e+00> : vector<8x8xf32>
    %73 = tpu.matmul %72, %6, %cst_59 {dimension_numbers = #tpu.dot_dimension_numbers<[1], [0], [0], [1], [0, 0, 1, 1], [], []>} : vector<8x32xf32>, vector<32x8xf32>, vector<8x8xf32> -> vector<8x8xf32>
    %c0_60 = arith.constant 0 : index
    %c13 = arith.constant 13 : index
    %c0_61 = arith.constant 0 : index
    %c0_62 = arith.constant 0 : index
    %74 = vector.load %arg6[%c0_60, %c13, %c0_61, %c0_62] : memref<1x16x8x8xf32, #tpu.memory_space<vmem>>, vector<1x1x8x8xf32>
    %75 = vector.shape_cast %74 : vector<1x1x8x8xf32> to vector<8x8xf32>
    %76 = vector.shape_cast %73 : vector<8x8xf32> to vector<1x1x8x8xf32>
    tpu.vector_store %arg6[%c0_60, %c13, %c0_61, %c0_62], %76 {strides = array<i32>} : memref<1x16x8x8xf32, #tpu.memory_space<vmem>>, vector<1x1x8x8xf32>,
    %77 = vector.extract_strided_slice %5 {offsets = [0, 448], sizes = [8, 32], strides = [1, 1]} : vector<8x512xf32> to vector<8x32xf32>
    %cst_63 = arith.constant dense<0.000000e+00> : vector<8x8xf32>
    %78 = tpu.matmul %77, %6, %cst_63 {dimension_numbers = #tpu.dot_dimension_numbers<[1], [0], [0], [1], [0, 0, 1, 1], [], []>} : vector<8x32xf32>, vector<32x8xf32>, vector<8x8xf32> -> vector<8x8xf32>
    %c0_64 = arith.constant 0 : index
    %c14 = arith.constant 14 : index
    %c0_65 = arith.constant 0 : index
    %c0_66 = arith.constant 0 : index
    %79 = vector.load %arg6[%c0_64, %c14, %c0_65, %c0_66] : memref<1x16x8x8xf32, #tpu.memory_space<vmem>>, vector<1x1x8x8xf32>
    %80 = vector.shape_cast %79 : vector<1x1x8x8xf32> to vector<8x8xf32>
    %81 = vector.shape_cast %78 : vector<8x8xf32> to vector<1x1x8x8xf32>
    tpu.vector_store %arg6[%c0_64, %c14, %c0_65, %c0_66], %81 {strides = array<i32>} : memref<1x16x8x8xf32, #tpu.memory_space<vmem>>, vector<1x1x8x8xf32>,
    %82 = vector.extract_strided_slice %5 {offsets = [0, 480], sizes = [8, 32], strides = [1, 1]} : vector<8x512xf32> to vector<8x32xf32>
    %cst_67 = arith.constant dense<0.000000e+00> : vector<8x8xf32>
    %83 = tpu.matmul %82, %6, %cst_67 {dimension_numbers = #tpu.dot_dimension_numbers<[1], [0], [0], [1], [0, 0, 1, 1], [], []>} : vector<8x32xf32>, vector<32x8xf32>, vector<8x8xf32> -> vector<8x8xf32>
    %c0_68 = arith.constant 0 : index
    %c15 = arith.constant 15 : index
    %c0_69 = arith.constant 0 : index
    %c0_70 = arith.constant 0 : index
    %84 = vector.load %arg6[%c0_68, %c15, %c0_69, %c0_70] : memref<1x16x8x8xf32, #tpu.memory_space<vmem>>, vector<1x1x8x8xf32>
    %85 = vector.shape_cast %84 : vector<1x1x8x8xf32> to vector<8x8xf32>
    %86 = vector.shape_cast %83 : vector<8x8xf32> to vector<1x1x8x8xf32>
    tpu.vector_store %arg6[%c0_68, %c15, %c0_69, %c0_70], %86 {strides = array<i32>} : memref<1x16x8x8xf32, #tpu.memory_space<vmem>>, vector<1x1x8x8xf32>,
    return
  }
  func.func @transform_0(%arg0: i32, %arg1: i32) -> (i32, i32, i32) {
    %c0_i32 = arith.constant 0 : i32
    %c0_i32_0 = arith.constant 0 : i32
    %c0_i32_1 = arith.constant 0 : i32
    return %arg0, %c0_i32, %c0_i32_0 : i32, i32, i32
  }
  func.func @transform_1(%arg0: i32, %arg1: i32) -> (i32, i32) {
    %c0_i32 = arith.constant 0 : i32
    %c0_i32_0 = arith.constant 0 : i32
    %c0_i32_1 = arith.constant 0 : i32
    return %c0_i32, %c0_i32_0 : i32, i32
  }
  func.func @transform_2(%arg0: i32, %arg1: i32) -> (i32, i32) {
    %c0_i32 = arith.constant 0 : i32
    %c0_i32_0 = arith.constant 0 : i32
    %c0_i32_1 = arith.constant 0 : i32
    return %c0_i32, %c0_i32_0 : i32, i32
  }
  func.func @transform_3(%arg0: i32, %arg1: i32) -> (i32, i32) {
    %c0_i32 = arith.constant 0 : i32
    %c0_i32_0 = arith.constant 0 : i32
    return %c0_i32, %arg1 : i32, i32
  }
  func.func @transform_4(%arg0: i32, %arg1: i32) -> (i32, i32, i32, i32) {
    %c0_i32 = arith.constant 0 : i32
    %c0_i32_0 = arith.constant 0 : i32
    %c0_i32_1 = arith.constant 0 : i32
    return %arg0, %arg1, %c0_i32, %c0_i32_0 : i32, i32, i32, i32
  }
}

</mosaic_0001>

<llo_original>
// kernel: _bilinear_pallas.1
$region0: #{_bilinear_pallas.1}
  #allocation0 [shape = 'u32[]', space=smem, size = 0x4, offset = 0x4, fixed_abs, tag = 'smem constant byte address 0x4 - core index']
  #allocation1 [shape = 'u32[72,128]{1,0:T(1,128)}', space=vmem, size = 0x9000, scoped, tag = 'internal scratch']
  #allocation2 [shape = 'f32[8,32]{1,0:T(8,128)}', space=vmem, size = 0x1000, scoped, tag = 'scratch operand']
  #allocation3 [shape = 'f32[32,8]{1,0:T(8,128)}', space=vmem, size = 0x4000, scoped, tag = 'scratch operand']
  %s0 = inlined_call_operand.vmem [shape: f32[2,8,32], index: 0, kind: input, shape index: {}]
  %s1 = inlined_call_operand.vmem [shape: f32[32,64], index: 1, kind: input, shape index: {}]
  %s2 = inlined_call_operand.vmem [shape: f32[1,64], index: 2, kind: input, shape index: {}]
  %s3 = inlined_call_operand.vmem [shape: f32[32,512], index: 3, kind: input, shape index: {}]
  %s4 = inlined_call_operand.vmem [shape: f32[2,16,8,8], index: 4, kind: output, shape index: {}]
  %s5 = sld [smem:[#allocation0]]
  $region53: #{_bilinear_pallas.1} parent=0
    _
  %s7 = ssub.s32 1, %s5
  %s8 = scalar_select 0, %s7, %s5
  loop: start=0, step=1, limit=4
  $region2: #{_bilinear_pallas.1} parent=0 // loop_pre_header
    _
  $region3: #{_bilinear_pallas.1} parent=0 // loop_header
    %s10 = sphi 0, %s14
    %p11 = scmp.ge.s32.totalorder %s10, 4
    %s17 = sphi 0, %s29
    %s18 = sphi 0, %s25
    %s19 = sphi 0, %s17
    %s20 = sphi 0, %s18
    %s21 = sphi 0, %s19
    %s22 = sphi 0, %s20
    %s32 = sphi 0, %s34
    %s35 = sphi 0, %s32
    %s36 = sphi 0, %s35
    %s52 = sphi 0, %s36
    %s56 = sphi 0, %s56
    %s58 = sphi 0, %s56
    %s59 = sphi 0, %s58
    %s73 = sphi 0, %s59
    %s77 = sphi 0, %s77
    %s79 = sphi 0, %s77
    %s80 = sphi 0, %s79
    %s94 = sphi 0, %s80
    %s100 = sphi 0, %s102
    %s103 = sphi 0, %s100
    %s104 = sphi 0, %s103
    %s120 = sphi 0, %s104
    %s128 = sphi 0, %s130
    %s131 = sphi 0, %s128
    %s132 = sphi 0, %s131
    %s148 = sphi 0, %s132
  $region4: #{_bilinear_pallas.1} parent=0 // loop_header_branch
    %13 = sbr.rel (%p11) target = $region8
  $region5: #{_bilinear_pallas.1} parent=0 // loop_body
    %s15 = ssub.s32 %s10, 1
    %s16 = ssub.s32 %s10, 2
    %s23 = sadd.s32 1, %s18
    %p24 = scmp.ge.s32.totalorder %s23, 1
    %s25 = scalar_select %p24, 0, %s23
    %s26 = sadd.s32 1, %s17
    %s27 = scalar_select %p24, %s26, %s17
    %p28 = scmp.ge.s32.totalorder %s27, 2
    %s29 = scalar_select %p28, 0, %s27
    %s30 = ssub.s32 %s17, %s29
    %p31 = scmp.eq.s32.totalorder %s30, 0
    %s33 = sadd.s32 %s32, 1
    %s34 = scalar_select %p31, %s32, %s33
    %p37 = pneg %p31
    %p38 = scmp.eq.s32.totalorder %s10, 1
    %p39 = por %p37, %p38
    %p40 = scmp.ne.s32.totalorder %s32, %s35
    %p41 = scmp.eq.s32.totalorder %s10, 0
    %p42 = por %p40, %p41
    %p43 = scmp.ne.s32.totalorder %s32, %s35
    %p44 = scmp.eq.s32.totalorder %s15, 1
    %p45 = por %p43, %p44
    %p46 = scmp.ne.s32.totalorder %s35, %s36
    %p47 = scmp.eq.s32.totalorder %s15, 0
    %p48 = por %p46, %p47
    %p49 = scmp.ne.s32.totalorder %s35, %s36
    %p50 = scmp.eq.s32.totalorder %s16, 1
    %p51 = por %p49, %p50
    %p53 = scmp.ne.s32.totalorder %s36, %s52
    %p54 = scmp.eq.s32.totalorder %s16, 0
    %p55 = por %p53, %p54
    %s57 = sadd.s32 %s56, 1
    %p60 = scmp.eq.s32.totalorder %s10, 1
    %p61 = scmp.ne.s32.totalorder %s56, %s58
    %p62 = scmp.eq.s32.totalorder %s10, 0
    %p63 = por %p61, %p62
    %p64 = scmp.ne.s32.totalorder %s56, %s58
    %p65 = scmp.eq.s32.totalorder %s15, 1
    %p66 = por %p64, %p65
    %p67 = scmp.ne.s32.totalorder %s58, %s59
    %p68 = scmp.eq.s32.totalorder %s15, 0
    %p69 = por %p67, %p68
    %p70 = scmp.ne.s32.totalorder %s58, %s59
    %p71 = scmp.eq.s32.totalorder %s16, 1
    %p72 = por %p70, %p71
    %p74 = scmp.ne.s32.totalorder %s59, %s73
    %p75 = scmp.eq.s32.totalorder %s16, 0
    %p76 = por %p74, %p75
    %s78 = sadd.s32 %s77, 1
    %p81 = scmp.eq.s32.totalorder %s10, 1
    %p82 = scmp.ne.s32.totalorder %s77, %s79
    %p83 = scmp.eq.s32.totalorder %s10, 0
    %p84 = por %p82, %p83
    %p85 = scmp.ne.s32.totalorder %s77, %s79
    %p86 = scmp.eq.s32.totalorder %s15, 1
    %p87 = por %p85, %p86
    %p88 = scmp.ne.s32.totalorder %s79, %s80
    %p89 = scmp.eq.s32.totalorder %s15, 0
    %p90 = por %p88, %p89
    %p91 = scmp.ne.s32.totalorder %s79, %s80
    %p92 = scmp.eq.s32.totalorder %s16, 1
    %p93 = por %p91, %p92
    %p95 = scmp.ne.s32.totalorder %s80, %s94
    %p96 = scmp.eq.s32.totalorder %s16, 0
    %p97 = por %p95, %p96
    %s98 = ssub.s32 %s18, %s25
    %p99 = scmp.eq.s32.totalorder %s98, 0
    %s101 = sadd.s32 %s100, 1
    %s102 = scalar_select %p99, %s100, %s101
    %p105 = pneg %p99
    %p106 = scmp.eq.s32.totalorder %s10, 1
    %p107 = por %p105, %p106
    %p108 = scmp.ne.s32.totalorder %s100, %s103
    %p109 = scmp.eq.s32.totalorder %s10, 0
    %p110 = por %p108, %p109
    %p111 = scmp.ne.s32.totalorder %s100, %s103
    %p112 = scmp.eq.s32.totalorder %s15, 1
    %p113 = por %p111, %p112
    %p114 = scmp.ne.s32.totalorder %s103, %s104
    %p115 = scmp.eq.s32.totalorder %s15, 0
    %p116 = por %p114, %p115
    %p117 = scmp.ne.s32.totalorder %s103, %s104
    %p118 = scmp.eq.s32.totalorder %s16, 1
    %p119 = por %p117, %p118
    %p121 = scmp.ne.s32.totalorder %s104, %s120
    %p122 = scmp.eq.s32.totalorder %s16, 0
    %p123 = por %p121, %p122
    %s124 = ssub.s32 %s17, %s29
    %s125 = ssub.s32 %s18, %s25
    %s126 = sor.u32 %s124, %s125
    %p127 = scmp.eq.s32.totalorder %s126, 0
    %s129 = sadd.s32 %s128, 1
    %s130 = scalar_select %p127, %s128, %s129
    %p133 = pneg %p127
    %p134 = scmp.eq.s32.totalorder %s10, 1
    %p135 = por %p133, %p134
    %p136 = scmp.ne.s32.totalorder %s128, %s131
    %p137 = scmp.eq.s32.totalorder %s10, 0
    %p138 = por %p136, %p137
    %p139 = scmp.ne.s32.totalorder %s128, %s131
    %p140 = scmp.eq.s32.totalorder %s15, 1
    %p141 = por %p139, %p140
    %p142 = scmp.ne.s32.totalorder %s131, %s132
    %p143 = scmp.eq.s32.totalorder %s15, 0
    %p144 = por %p142, %p143
    %p145 = scmp.ne.s32.totalorder %s131, %s132
    %p146 = scmp.eq.s32.totalorder %s16, 1
    %p147 = por %p145, %p146
    %p149 = scmp.ne.s32.totalorder %s132, %s148
    %p150 = scmp.eq.s32.totalorder %s16, 0
    %p151 = por %p149, %p150
    %p152 = scmp.le.s32.totalorder 1, %s10
    %p153 = scmp.lt.s32.totalorder %s10, 3
    %p154 = pnand %p152, %p153
    %p155 = pneg %p154
    // Predicated region
    $region9: #{_bilinear_pallas.1} parent=5 // pred_check
      _
    $region10: #{_bilinear_pallas.1} parent=5 // pred_check_branch
      %157 = sbr.rel (%p154) target = $region12
    $region11: #{_bilinear_pallas.1} parent=5 // pred_region
      %s158 = ssub.s32 %s10, 1
      // Predicated region
      $region13: #{_bilinear_pallas.1} parent=11 // pred_check
        %p159 = pneg %p69
      $region14: #{_bilinear_pallas.1} parent=11 // pred_check_branch
        %161 = sbr.rel (%p159) target = $region16
      $region15: #{_bilinear_pallas.1} parent=11 // pred_region
        _
      $region16: #{_bilinear_pallas.1} parent=11 // pred_fallthru
        _
      // Predicated region
      $region17: #{_bilinear_pallas.1} parent=11 // pred_check
        %p162 = pneg %p90
      $region18: #{_bilinear_pallas.1} parent=11 // pred_check_branch
        %164 = sbr.rel (%p162) target = $region20
      $region19: #{_bilinear_pallas.1} parent=11 // pred_region
        _
      $region20: #{_bilinear_pallas.1} parent=11 // pred_fallthru
        _
      // Predicated region
      $region21: #{_bilinear_pallas.1} parent=11 // pred_check
        %p165 = pneg %p116
      $region22: #{_bilinear_pallas.1} parent=11 // pred_check_branch
        %167 = sbr.rel (%p165) target = $region24
      $region23: #{_bilinear_pallas.1} parent=11 // pred_region
        %s168 = smul.u32 4, %s20
        %p169 = scmp.lt.s32.totalorder %s168, 3
        %s170 = scalar_select %p169, %s168, 3
        %s171 = smul.addr %s170, 8
        %s172 = scalar_lea.vmem %s3, %s171
        %s173 = smul.u32 4, %s20
      $region24: #{_bilinear_pallas.1} parent=11 // pred_fallthru
        _
    $region12: #{_bilinear_pallas.1} parent=5 // pred_fallthru
      _
    %p174 = scmp.lt.s32.totalorder %s10, 2
    // Predicated region
    $region25: #{_bilinear_pallas.1} parent=5 // pred_check
      %p175 = pneg %p174
    $region26: #{_bilinear_pallas.1} parent=5 // pred_check_branch
      %177 = sbr.rel (%p175) target = $region28
    $region27: #{_bilinear_pallas.1} parent=5 // pred_region
      // Predicated region
      $region29: #{_bilinear_pallas.1} parent=27 // pred_check
        %p178 = pneg %p42
      $region30: #{_bilinear_pallas.1} parent=27 // pred_check_branch
        %180 = sbr.rel (%p178) target = $region32
      $region31: #{_bilinear_pallas.1} parent=27 // pred_region
        %p181 = scmp.lt.s32.totalorder %s17, 1
        %s182 = scalar_select %p181, %s17, 1
        %s183 = smul.addr %s182, 8
        %s184 = scalar_lea.vmem %s0, %s183
      $region32: #{_bilinear_pallas.1} parent=27 // pred_fallthru
        _
    $region28: #{_bilinear_pallas.1} parent=5 // pred_fallthru
      _
    %p185 = scmp.le.s32.totalorder 1, %s10
    %p186 = scmp.lt.s32.totalorder %s10, 3
    %p187 = pnand %p185, %p186
    %p188 = pneg %p187
    // Predicated region
    $region33: #{_bilinear_pallas.1} parent=5 // pred_check
      _
    $region34: #{_bilinear_pallas.1} parent=5 // pred_check_branch
      %190 = sbr.rel (%p187) target = $region36
    $region35: #{_bilinear_pallas.1} parent=5 // pred_region
      %s191 = ssub.s32 %s10, 1
      %p192 = scmp.lt.s32.totalorder %s19, 1
      %s193 = scalar_select %p192, %s19, 1
      %s194 = smul.addr %s193, 8
      %s195 = scalar_lea.vmem %s0, %s194
      %p196 = pneg %p48
      %p197 = pneg %p45
      %p198 = pneg %p69
      %p199 = pneg %p66
      %p200 = pneg %p90
      %p201 = pneg %p87
      %s202 = smul.u32 4, %s20
      %p203 = scmp.lt.s32.totalorder %s202, 3
      %s204 = scalar_select %p203, %s202, 3
      %s205 = smul.addr %s204, 8
      %s206 = scalar_lea.vmem %s3, %s205
      %p207 = pneg %p116
      %p208 = pneg %p113
      %p209 = pneg %p144
      %p210 = pneg %p141
      %s211 = smul.u32 16, %s20
      %p212 = scmp.lt.s32.totalorder %s19, 1
      %s213 = scalar_select %p212, %s19, 1
      %p214 = scmp.lt.s32.totalorder %s211, 15
      %s215 = scalar_select %p214, %s211, 15
      %s216 = smul.addr %s213, 16
      %s217 = sadd.s32 %s215, %s216
      %s218 = smul.addr %s217, 8
      %s219 = scalar_lea.vmem %s4, %s218
      %p220 = scmp.lt.s32.totalorder %s19, 1
      %s221 = scalar_select %p220, %s19, 1
      %s222 = smul.addr %s221, 8
      %s223 = scalar_lea.vmem %s0, %s222
      %s224 = smul.u32 4, %s20
      %p225 = scmp.lt.s32.totalorder %s224, 3
      %s226 = scalar_select %p225, %s224, 3
      %s227 = smul.addr %s226, 8
      %s228 = scalar_lea.vmem %s3, %s227
      %s229 = smul.u32 4, %s20
      %s230 = smul.u32 16, %s20
      %p231 = scmp.lt.s32.totalorder %s19, 1
      %s232 = scalar_select %p231, %s19, 1
      %p233 = scmp.lt.s32.totalorder %s230, 15
      %s234 = scalar_select %p233, %s230, 15
      %s235 = smul.addr %s232, 16
      %s236 = sadd.s32 %s234, %s235
      %s237 = smul.addr %s236, 8
      %s238 = scalar_lea.vmem %s4, %s237
      %s239 = smul.u32 16, %s20
      %p240 = scmp.eq.s32.totalorder %s20, 0
      // Predicated region
      $region37: #{_bilinear_pallas.1} parent=35 // pred_check
        %p241 = pneg %p240
      $region38: #{_bilinear_pallas.1} parent=35 // pred_check_branch
        %243 = sbr.rel (%p241) target = $region40
      $region39: #{_bilinear_pallas.1} parent=35 // pred_region
        %v244 = vld [vmem:[%s223] sm:$0xff]
        %vm245 = vcmp.ge.f32.partialorder %v244, 0.0
        %v246 = vmul.f32 %v244, 0.01
        %v247 = vsel %vm245, %v244, %v246
        %v248 = vld [vmem:[%s1] sm:$0xff]
        %v249 = vld [vmem:[%s1 + $0x8] sm:$0xff]
        %v250 = vld [vmem:[%s1 + $0x10] sm:$0xff]
        %v251 = vld [vmem:[%s1 + $0x18] sm:$0xff]
        %v252 = vld [vmem:[%s2] sm:$0x1]
        %v254 = vperm.slane %v252, 0
        %vm256 = vcmask 261120
        %v258 = vsel %vm256, %v247, 0
        %260 = vmatpush.msra.mxu0 0.0
        %261 = vmatpush.msra.mxu0 0.0
        %262 = vmatpush.msra.mxu0 0.0
        %263 = vmatpush.msra.mxu0 0.0
        %264 = vmatpush.msra.mxu0 0.0
        %265 = vmatpush.msra.mxu0 0.0
        %266 = vmatpush.msra.mxu0 0.0
        %267 = vmatpush.msra.mxu0 0.0
        %268 = vmatpush.msra.mxu0 0.0
        %269 = vmatpush.msra.mxu0 0.0
        %270 = vmatpush.msra.mxu0 0.0
        %271 = vmatpush.msra.mxu0 0.0
        %272 = vmatpush.msra.mxu0 %v251
        %273 = vmatpush.msra.mxu0 %v250
        %274 = vmatpush.msra.mxu0 %v249
        %275 = vmatpush.msra.mxu0 %v248
        %276 = vmatmul.f32.gmra.mxu0 %v258
        %v277 = vpop.f32.mrf.mxu0
        %v278 = vadd.f32 %v254, %v277
        %279 = vdwg.mxu0
        %280 = vst.msk [vmem:[#allocation2] sm:$0xff] %vm256, %v278
        %282 = vrot.lane.b32.xlu0 %v278, 96
        %v283 = vpop.permute.xlu0 %282
        %285 = vxpose.xlu0.b32.start [1/16] %v283, 128
        %286 = vxpose.xlu0.b32.cont [2/16] 0.0, 128
        %287 = vxpose.xlu0.b32.cont [3/16] 0.0, 128
        %288 = vxpose.xlu0.b32.cont [4/16] 0.0, 128
        %289 = vxpose.xlu0.b32.cont [5/16] 0.0, 128
        %290 = vxpose.xlu0.b32.cont [6/16] 0.0, 128
        %291 = vxpose.xlu0.b32.cont [7/16] 0.0, 128
        %292 = vxpose.xlu0.b32.cont [8/16] 0.0, 128
        %293 = vxpose.xlu0.b32.cont [9/16] 0.0, 128
        %294 = vxpose.xlu0.b32.cont [10/16] 0.0, 128
        %295 = vxpose.xlu0.b32.cont [11/16] 0.0, 128
        %296 = vxpose.xlu0.b32.cont [12/16] 0.0, 128
        %297 = vxpose.xlu0.b32.cont [13/16] 0.0, 128
        %298 = vxpose.xlu0.b32.cont [14/16] 0.0, 128
        %299 = vxpose.xlu0.b32.cont [15/16] 0.0, 128
        %300 = vxpose.xlu0.b32.end [16/16] 0.0, 128
        %v301 = vpop.trf.xlu0
        %v302 = vpop.trf.xlu0
        %v303 = vpop.trf.xlu0
        %v304 = vpop.trf.xlu0
        %v305 = vpop.trf.xlu0
        %v306 = vpop.trf.xlu0
        %v307 = vpop.trf.xlu0
        %v308 = vpop.trf.xlu0
        %v309 = vpop.trf.xlu0
        %v310 = vpop.trf.xlu0
        %v311 = vpop.trf.xlu0
        %v312 = vpop.trf.xlu0
        %v313 = vpop.trf.xlu0
        %v314 = vpop.trf.xlu0
        %v315 = vpop.trf.xlu0
        %v316 = vpop.trf.xlu0
        %vm317 = vcmask 64512
        %318 = vst.msk [vmem:[#allocation3] sm:$0xff] %vm317, %v301
        %319 = vst.msk [vmem:[#allocation3 + $0x8] sm:$0xff] %vm317, %v302
        %320 = vst.msk [vmem:[#allocation3 + $0x10] sm:$0xff] %vm317, %v303
        %321 = vst.msk [vmem:[#allocation3 + $0x18] sm:$0xff] %vm317, %v304
      $region40: #{_bilinear_pallas.1} parent=35 // pred_fallthru
        _
      %v322 = vld [vmem:[#allocation2] sm:$0xff]
      %v323 = vld [vmem:[%s228] sm:$0xff]
      %v324 = vld [vmem:[%s228 + $0x8] sm:$0xff]
      %v325 = vld [vmem:[%s228 + $0x10] sm:$0xff]
      %v326 = vld [vmem:[%s228 + $0x18] sm:$0xff]
      %v327 = vld [vmem:[%s228 + $0x20] sm:$0xff]
      %v328 = vld [vmem:[%s228 + $0x28] sm:$0xff]
      %v329 = vld [vmem:[%s228 + $0x30] sm:$0xff]
      %v330 = vld [vmem:[%s228 + $0x38] sm:$0xff]
      %v331 = vld [vmem:[%s228 + $0x40] sm:$0xff]
      %v332 = vld [vmem:[%s228 + $0x48] sm:$0xff]
      %v333 = vld [vmem:[%s228 + $0x50] sm:$0xff]
      %v334 = vld [vmem:[%s228 + $0x58] sm:$0xff]
      %v335 = vld [vmem:[%s228 + $0x60] sm:$0xff]
      %v336 = vld [vmem:[%s228 + $0x68] sm:$0xff]
      %v337 = vld [vmem:[%s228 + $0x70] sm:$0xff]
      %v338 = vld [vmem:[%s228 + $0x78] sm:$0xff]
      %vm339 = vcmask 261120
      %v341 = vsel %vm339, %v322, 0
      %343 = vmatpush.msra.mxu0 0.0
      %344 = vmatpush.msra.mxu0 0.0
      %345 = vmatpush.msra.mxu0 0.0
      %346 = vmatpush.msra.mxu0 0.0
      %347 = vmatpush.msra.mxu0 0.0
      %348 = vmatpush.msra.mxu0 0.0
      %349 = vmatpush.msra.mxu0 0.0
      %350 = vmatpush.msra.mxu0 0.0
      %351 = vmatpush.msra.mxu0 0.0
      %352 = vmatpush.msra.mxu0 0.0
      %353 = vmatpush.msra.mxu0 0.0
      %354 = vmatpush.msra.mxu0 0.0
      %355 = vmatpush.msra.mxu0 %v335
      %356 = vmatpush.msra.mxu0 %v331
      %357 = vmatpush.msra.mxu0 %v327
      %358 = vmatpush.msra.mxu0 %v323
      %359 = vmatmul.f32.gmra.mxu0 %v341
      %v360 = vpop.f32.mrf.mxu0
      %v361 = vadd.f32 0.0, %v360
      %362 = vdwg.mxu0
      %363 = vmatpush.msra.mxu0 0.0
      %364 = vmatpush.msra.mxu0 0.0
      %365 = vmatpush.msra.mxu0 0.0
      %366 = vmatpush.msra.mxu0 0.0
      %367 = vmatpush.msra.mxu0 0.0
      %368 = vmatpush.msra.mxu0 0.0
      %369 = vmatpush.msra.mxu0 0.0
      %370 = vmatpush.msra.mxu0 0.0
      %371 = vmatpush.msra.mxu0 0.0
      %372 = vmatpush.msra.mxu0 0.0
      %373 = vmatpush.msra.mxu0 0.0
      %374 = vmatpush.msra.mxu0 0.0
      %375 = vmatpush.msra.mxu0 %v336
      %376 = vmatpush.msra.mxu0 %v332
      %377 = vmatpush.msra.mxu0 %v328
      %378 = vmatpush.msra.mxu0 %v324
      %379 = vmatmul.f32.gmra.mxu0 %v341
      %v380 = vpop.f32.mrf.mxu0
      %v381 = vadd.f32 0.0, %v380
      %382 = vdwg.mxu0
      %383 = vmatpush.msra.mxu0 0.0
      %384 = vmatpush.msra.mxu0 0.0
      %385 = vmatpush.msra.mxu0 0.0
      %386 = vmatpush.msra.mxu0 0.0
      %387 = vmatpush.msra.mxu0 0.0
      %388 = vmatpush.msra.mxu0 0.0
      %389 = vmatpush.msra.mxu0 0.0
      %390 = vmatpush.msra.mxu0 0.0
      %391 = vmatpush.msra.mxu0 0.0
      %392 = vmatpush.msra.mxu0 0.0
      %393 = vmatpush.msra.mxu0 0.0
      %394 = vmatpush.msra.mxu0 0.0
      %395 = vmatpush.msra.mxu0 %v337
      %396 = vmatpush.msra.mxu0 %v333
      %397 = vmatpush.msra.mxu0 %v329
      %398 = vmatpush.msra.mxu0 %v325
      %399 = vmatmul.f32.gmra.mxu0 %v341
      %v400 = vpop.f32.mrf.mxu0
      %v401 = vadd.f32 0.0, %v400
      %402 = vdwg.mxu0
      %403 = vmatpush.msra.mxu0 0.0
      %404 = vmatpush.msra.mxu0 0.0
      %405 = vmatpush.msra.mxu0 0.0
      %406 = vmatpush.msra.mxu0 0.0
      %407 = vmatpush.msra.mxu0 0.0
      %408 = vmatpush.msra.mxu0 0.0
      %409 = vmatpush.msra.mxu0 0.0
      %410 = vmatpush.msra.mxu0 0.0
      %411 = vmatpush.msra.mxu0 0.0
      %412 = vmatpush.msra.mxu0 0.0
      %413 = vmatpush.msra.mxu0 0.0
      %414 = vmatpush.msra.mxu0 0.0
      %415 = vmatpush.msra.mxu0 %v338
      %416 = vmatpush.msra.mxu0 %v334
      %417 = vmatpush.msra.mxu0 %v330
      %418 = vmatpush.msra.mxu0 %v326
      %419 = vmatmul.f32.gmra.mxu0 %v341
      %v420 = vpop.f32.mrf.mxu0
      %v421 = vadd.f32 0.0, %v420
      %422 = vdwg.mxu0
      %v423 = vld [vmem:[#allocation3] sm:$0xff]
      %v424 = vld [vmem:[#allocation3 + $0x8] sm:$0xff]
      %v425 = vld [vmem:[#allocation3 + $0x10] sm:$0xff]
      %v426 = vld [vmem:[#allocation3 + $0x18] sm:$0xff]
      %v428 = vsel %vm339, %v361, 0
      %430 = vmatpush.msra.mxu0 0.0
      %431 = vmatpush.msra.mxu0 0.0
      %432 = vmatpush.msra.mxu0 0.0
      %433 = vmatpush.msra.mxu0 0.0
      %434 = vmatpush.msra.mxu0 0.0
      %435 = vmatpush.msra.mxu0 0.0
      %436 = vmatpush.msra.mxu0 0.0
      %437 = vmatpush.msra.mxu0 0.0
      %438 = vmatpush.msra.mxu0 0.0
      %439 = vmatpush.msra.mxu0 0.0
      %440 = vmatpush.msra.mxu0 0.0
      %441 = vmatpush.msra.mxu0 0.0
      %442 = vmatpush.msra.mxu0 %v426
      %443 = vmatpush.msra.mxu0 %v425
      %444 = vmatpush.msra.mxu0 %v424
      %445 = vmatpush.msra.mxu0 %v423
      %446 = vmatmul.f32.gmra.mxu0 %v428
      %v447 = vpop.f32.mrf.mxu0
      %v448 = vadd.f32 0.0, %v447
      %449 = vdwg.mxu0
      %vm450 = vcmask 64512
      %451 = vst.msk [vmem:[%s238] sm:$0xff] %vm450, %v448
      %452 = vrot.lane.b32.xlu0 %v361, 96
      %v453 = vpop.permute.xlu0 %452
      %v454 = vsel %vm339, %v453, 0
      %456 = vmatpush.msra.mxu0 0.0
      %457 = vmatpush.msra.mxu0 0.0
      %458 = vmatpush.msra.mxu0 0.0
      %459 = vmatpush.msra.mxu0 0.0
      %460 = vmatpush.msra.mxu0 0.0
      %461 = vmatpush.msra.mxu0 0.0
      %462 = vmatpush.msra.mxu0 0.0
      %463 = vmatpush.msra.mxu0 0.0
      %464 = vmatpush.msra.mxu0 0.0
      %465 = vmatpush.msra.mxu0 0.0
      %466 = vmatpush.msra.mxu0 0.0
      %467 = vmatpush.msra.mxu0 0.0
      %468 = vmatpush.msra.mxu0 %v426
      %469 = vmatpush.msra.mxu0 %v425
      %470 = vmatpush.msra.mxu0 %v424
      %471 = vmatpush.msra.mxu0 %v423
      %472 = vmatmul.f32.gmra.mxu0 %v454
      %v473 = vpop.f32.mrf.mxu0
      %v474 = vadd.f32 0.0, %v473
      %475 = vdwg.mxu0
      %s476 = scalar_lea.vmem %s238, 8
      %477 = vst.msk [vmem:[%s476] sm:$0xff] %vm450, %v474
      %478 = vrot.lane.b32.xlu0 %v361, 64
      %v479 = vpop.permute.xlu0 %478
      %v480 = vsel %vm339, %v479, 0
      %482 = vmatpush.msra.mxu0 0.0
      %483 = vmatpush.msra.mxu0 0.0
      %484 = vmatpush.msra.mxu0 0.0
      %485 = vmatpush.msra.mxu0 0.0
      %486 = vmatpush.msra.mxu0 0.0
      %487 = vmatpush.msra.mxu0 0.0
      %488 = vmatpush.msra.mxu0 0.0
      %489 = vmatpush.msra.mxu0 0.0
      %490 = vmatpush.msra.mxu0 0.0
      %491 = vmatpush.msra.mxu0 0.0
      %492 = vmatpush.msra.mxu0 0.0
      %493 = vmatpush.msra.mxu0 0.0
      %494 = vmatpush.msra.mxu0 %v426
      %495 = vmatpush.msra.mxu0 %v425
      %496 = vmatpush.msra.mxu0 %v424
      %497 = vmatpush.msra.mxu0 %v423
      %498 = vmatmul.f32.gmra.mxu0 %v480
      %v499 = vpop.f32.mrf.mxu0
      %v500 = vadd.f32 0.0, %v499
      %501 = vdwg.mxu0
      %s502 = scalar_lea.vmem %s238, 16
      %503 = vst.msk [vmem:[%s502] sm:$0xff] %vm450, %v500
      %504 = vrot.lane.b32.xlu0 %v361, 32
      %v505 = vpop.permute.xlu0 %504
      %v506 = vsel %vm339, %v505, 0
      %508 = vmatpush.msra.mxu0 0.0
      %509 = vmatpush.msra.mxu0 0.0
      %510 = vmatpush.msra.mxu0 0.0
      %511 = vmatpush.msra.mxu0 0.0
      %512 = vmatpush.msra.mxu0 0.0
      %513 = vmatpush.msra.mxu0 0.0
      %514 = vmatpush.msra.mxu0 0.0
      %515 = vmatpush.msra.mxu0 0.0
      %516 = vmatpush.msra.mxu0 0.0
      %517 = vmatpush.msra.mxu0 0.0
      %518 = vmatpush.msra.mxu0 0.0
      %519 = vmatpush.msra.mxu0 0.0
      %520 = vmatpush.msra.mxu0 %v426
      %521 = vmatpush.msra.mxu0 %v425
      %522 = vmatpush.msra.mxu0 %v424
      %523 = vmatpush.msra.mxu0 %v423
      %524 = vmatmul.f32.gmra.mxu0 %v506
      %v525 = vpop.f32.mrf.mxu0
      %v526 = vadd.f32 0.0, %v525
      %527 = vdwg.mxu0
      %s528 = scalar_lea.vmem %s238, 24
      %529 = vst.msk [vmem:[%s528] sm:$0xff] %vm450, %v526
      %v531 = vsel %vm339, %v381, 0
      %533 = vmatpush.msra.mxu0 0.0
      %534 = vmatpush.msra.mxu0 0.0
      %535 = vmatpush.msra.mxu0 0.0
      %536 = vmatpush.msra.mxu0 0.0
      %537 = vmatpush.msra.mxu0 0.0
      %538 = vmatpush.msra.mxu0 0.0
      %539 = vmatpush.msra.mxu0 0.0
      %540 = vmatpush.msra.mxu0 0.0
      %541 = vmatpush.msra.mxu0 0.0
      %542 = vmatpush.msra.mxu0 0.0
      %543 = vmatpush.msra.mxu0 0.0
      %544 = vmatpush.msra.mxu0 0.0
      %545 = vmatpush.msra.mxu0 %v426
      %546 = vmatpush.msra.mxu0 %v425
      %547 = vmatpush.msra.mxu0 %v424
      %548 = vmatpush.msra.mxu0 %v423
      %549 = vmatmul.f32.gmra.mxu0 %v531
      %v550 = vpop.f32.mrf.mxu0
      %v551 = vadd.f32 0.0, %v550
      %552 = vdwg.mxu0
      %s553 = scalar_lea.vmem %s238, 32
      %554 = vst.msk [vmem:[%s553] sm:$0xff] %vm450, %v551
      %555 = vrot.lane.b32.xlu0 %v381, 96
      %v556 = vpop.permute.xlu0 %555
      %v557 = vsel %vm339, %v556, 0
      %559 = vmatpush.msra.mxu0 0.0
      %560 = vmatpush.msra.mxu0 0.0
      %561 = vmatpush.msra.mxu0 0.0
      %562 = vmatpush.msra.mxu0 0.0
      %563 = vmatpush.msra.mxu0 0.0
      %564 = vmatpush.msra.mxu0 0.0
      %565 = vmatpush.msra.mxu0 0.0
      %566 = vmatpush.msra.mxu0 0.0
      %567 = vmatpush.msra.mxu0 0.0
      %568 = vmatpush.msra.mxu0 0.0
      %569 = vmatpush.msra.mxu0 0.0
      %570 = vmatpush.msra.mxu0 0.0
      %571 = vmatpush.msra.mxu0 %v426
      %572 = vmatpush.msra.mxu0 %v425
      %573 = vmatpush.msra.mxu0 %v424
      %574 = vmatpush.msra.mxu0 %v423
      %575 = vmatmul.f32.gmra.mxu0 %v557
      %v576 = vpop.f32.mrf.mxu0
      %v577 = vadd.f32 0.0, %v576
      %578 = vdwg.mxu0
      %s579 = scalar_lea.vmem %s238, 40
      %580 = vst.msk [vmem:[%s579] sm:$0xff] %vm450, %v577
      %581 = vrot.lane.b32.xlu0 %v381, 64
      %v582 = vpop.permute.xlu0 %581
      %v583 = vsel %vm339, %v582, 0
      %585 = vmatpush.msra.mxu0 0.0
      %586 = vmatpush.msra.mxu0 0.0
      %587 = vmatpush.msra.mxu0 0.0
      %588 = vmatpush.msra.mxu0 0.0
      %589 = vmatpush.msra.mxu0 0.0
      %590 = vmatpush.msra.mxu0 0.0
      %591 = vmatpush.msra.mxu0 0.0
      %592 = vmatpush.msra.mxu0 0.0
      %593 = vmatpush.msra.mxu0 0.0
      %594 = vmatpush.msra.mxu0 0.0
      %595 = vmatpush.msra.mxu0 0.0
      %596 = vmatpush.msra.mxu0 0.0
      %597 = vmatpush.msra.mxu0 %v426
      %598 = vmatpush.msra.mxu0 %v425
      %599 = vmatpush.msra.mxu0 %v424
      %600 = vmatpush.msra.mxu0 %v423
      %601 = vmatmul.f32.gmra.mxu0 %v583
      %v602 = vpop.f32.mrf.mxu0
      %v603 = vadd.f32 0.0, %v602
      %604 = vdwg.mxu0
      %s605 = scalar_lea.vmem %s238, 48
      %606 = vst.msk [vmem:[%s605] sm:$0xff] %vm450, %v603
      %607 = vrot.lane.b32.xlu0 %v381, 32
      %v608 = vpop.permute.xlu0 %607
      %v609 = vsel %vm339, %v608, 0
      %611 = vmatpush.msra.mxu0 0.0
      %612 = vmatpush.msra.mxu0 0.0
      %613 = vmatpush.msra.mxu0 0.0
      %614 = vmatpush.msra.mxu0 0.0
      %615 = vmatpush.msra.mxu0 0.0
      %616 = vmatpush.msra.mxu0 0.0
      %617 = vmatpush.msra.mxu0 0.0
      %618 = vmatpush.msra.mxu0 0.0
      %619 = vmatpush.msra.mxu0 0.0
      %620 = vmatpush.msra.mxu0 0.0
      %621 = vmatpush.msra.mxu0 0.0
      %622 = vmatpush.msra.mxu0 0.0
      %623 = vmatpush.msra.mxu0 %v426
      %624 = vmatpush.msra.mxu0 %v425
      %625 = vmatpush.msra.mxu0 %v424
      %626 = vmatpush.msra.mxu0 %v423
      %627 = vmatmul.f32.gmra.mxu0 %v609
      %v628 = vpop.f32.mrf.mxu0
      %v629 = vadd.f32 0.0, %v628
      %630 = vdwg.mxu0
      %s631 = scalar_lea.vmem %s238, 56
      %632 = vst.msk [vmem:[%s631] sm:$0xff] %vm450, %v629
      %v634 = vsel %vm339, %v401, 0
      %636 = vmatpush.msra.mxu0 0.0
      %637 = vmatpush.msra.mxu0 0.0
      %638 = vmatpush.msra.mxu0 0.0
      %639 = vmatpush.msra.mxu0 0.0
      %640 = vmatpush.msra.mxu0 0.0
      %641 = vmatpush.msra.mxu0 0.0
      %642 = vmatpush.msra.mxu0 0.0
      %643 = vmatpush.msra.mxu0 0.0
      %644 = vmatpush.msra.mxu0 0.0
      %645 = vmatpush.msra.mxu0 0.0
      %646 = vmatpush.msra.mxu0 0.0
      %647 = vmatpush.msra.mxu0 0.0
      %648 = vmatpush.msra.mxu0 %v426
      %649 = vmatpush.msra.mxu0 %v425
      %650 = vmatpush.msra.mxu0 %v424
      %651 = vmatpush.msra.mxu0 %v423
      %652 = vmatmul.f32.gmra.mxu0 %v634
      %v653 = vpop.f32.mrf.mxu0
      %v654 = vadd.f32 0.0, %v653
      %655 = vdwg.mxu0
      %s656 = scalar_lea.vmem %s238, 64
      %657 = vst.msk [vmem:[%s656] sm:$0xff] %vm450, %v654
      %658 = vrot.lane.b32.xlu0 %v401, 96
      %v659 = vpop.permute.xlu0 %658
      %v660 = vsel %vm339, %v659, 0
      %662 = vmatpush.msra.mxu0 0.0
      %663 = vmatpush.msra.mxu0 0.0
      %664 = vmatpush.msra.mxu0 0.0
      %665 = vmatpush.msra.mxu0 0.0
      %666 = vmatpush.msra.mxu0 0.0
      %667 = vmatpush.msra.mxu0 0.0
      %668 = vmatpush.msra.mxu0 0.0
      %669 = vmatpush.msra.mxu0 0.0
      %670 = vmatpush.msra.mxu0 0.0
      %671 = vmatpush.msra.mxu0 0.0
      %672 = vmatpush.msra.mxu0 0.0
      %673 = vmatpush.msra.mxu0 0.0
      %674 = vmatpush.msra.mxu0 %v426
      %675 = vmatpush.msra.mxu0 %v425
      %676 = vmatpush.msra.mxu0 %v424
      %677 = vmatpush.msra.mxu0 %v423
      %678 = vmatmul.f32.gmra.mxu0 %v660
      %v679 = vpop.f32.mrf.mxu0
      %v680 = vadd.f32 0.0, %v679
      %681 = vdwg.mxu0
      %s682 = scalar_lea.vmem %s238, 72
      %683 = vst.msk [vmem:[%s682] sm:$0xff] %vm450, %v680
      %684 = vrot.lane.b32.xlu0 %v401, 64
      %v685 = vpop.permute.xlu0 %684
      %v686 = vsel %vm339, %v685, 0
      %688 = vmatpush.msra.mxu0 0.0
      %689 = vmatpush.msra.mxu0 0.0
      %690 = vmatpush.msra.mxu0 0.0
      %691 = vmatpush.msra.mxu0 0.0
      %692 = vmatpush.msra.mxu0 0.0
      %693 = vmatpush.msra.mxu0 0.0
      %694 = vmatpush.msra.mxu0 0.0
      %695 = vmatpush.msra.mxu0 0.0
      %696 = vmatpush.msra.mxu0 0.0
      %697 = vmatpush.msra.mxu0 0.0
      %698 = vmatpush.msra.mxu0 0.0
      %699 = vmatpush.msra.mxu0 0.0
      %700 = vmatpush.msra.mxu0 %v426
      %701 = vmatpush.msra.mxu0 %v425
      %702 = vmatpush.msra.mxu0 %v424
      %703 = vmatpush.msra.mxu0 %v423
      %704 = vmatmul.f32.gmra.mxu0 %v686
      %v705 = vpop.f32.mrf.mxu0
      %v706 = vadd.f32 0.0, %v705
      %707 = vdwg.mxu0
      %s708 = scalar_lea.vmem %s238, 80
      %709 = vst.msk [vmem:[%s708] sm:$0xff] %vm450, %v706
      %710 = vrot.lane.b32.xlu0 %v401, 32
      %v711 = vpop.permute.xlu0 %710
      %v712 = vsel %vm339, %v711, 0
      %714 = vmatpush.msra.mxu0 0.0
      %715 = vmatpush.msra.mxu0 0.0
      %716 = vmatpush.msra.mxu0 0.0
      %717 = vmatpush.msra.mxu0 0.0
      %718 = vmatpush.msra.mxu0 0.0
      %719 = vmatpush.msra.mxu0 0.0
      %720 = vmatpush.msra.mxu0 0.0
      %721 = vmatpush.msra.mxu0 0.0
      %722 = vmatpush.msra.mxu0 0.0
      %723 = vmatpush.msra.mxu0 0.0
      %724 = vmatpush.msra.mxu0 0.0
      %725 = vmatpush.msra.mxu0 0.0
      %726 = vmatpush.msra.mxu0 %v426
      %727 = vmatpush.msra.mxu0 %v425
      %728 = vmatpush.msra.mxu0 %v424
      %729 = vmatpush.msra.mxu0 %v423
      %730 = vmatmul.f32.gmra.mxu0 %v712
      %v731 = vpop.f32.mrf.mxu0
      %v732 = vadd.f32 0.0, %v731
      %733 = vdwg.mxu0
      %s734 = scalar_lea.vmem %s238, 88
      %735 = vst.msk [vmem:[%s734] sm:$0xff] %vm450, %v732
      %v737 = vsel %vm339, %v421, 0
      %739 = vmatpush.msra.mxu0 0.0
      %740 = vmatpush.msra.mxu0 0.0
      %741 = vmatpush.msra.mxu0 0.0
      %742 = vmatpush.msra.mxu0 0.0
      %743 = vmatpush.msra.mxu0 0.0
      %744 = vmatpush.msra.mxu0 0.0
      %745 = vmatpush.msra.mxu0 0.0
      %746 = vmatpush.msra.mxu0 0.0
      %747 = vmatpush.msra.mxu0 0.0
      %748 = vmatpush.msra.mxu0 0.0
      %749 = vmatpush.msra.mxu0 0.0
      %750 = vmatpush.msra.mxu0 0.0
      %751 = vmatpush.msra.mxu0 %v426
      %752 = vmatpush.msra.mxu0 %v425
      %753 = vmatpush.msra.mxu0 %v424
      %754 = vmatpush.msra.mxu0 %v423
      %755 = vmatmul.f32.gmra.mxu0 %v737
      %v756 = vpop.f32.mrf.mxu0
      %v757 = vadd.f32 0.0, %v756
      %758 = vdwg.mxu0
      %s759 = scalar_lea.vmem %s238, 96
      %760 = vst.msk [vmem:[%s759] sm:$0xff] %vm450, %v757
      %761 = vrot.lane.b32.xlu0 %v421, 96
      %v762 = vpop.permute.xlu0 %761
      %v763 = vsel %vm339, %v762, 0
      %765 = vmatpush.msra.mxu0 0.0
      %766 = vmatpush.msra.mxu0 0.0
      %767 = vmatpush.msra.mxu0 0.0
      %768 = vmatpush.msra.mxu0 0.0
      %769 = vmatpush.msra.mxu0 0.0
      %770 = vmatpush.msra.mxu0 0.0
      %771 = vmatpush.msra.mxu0 0.0
      %772 = vmatpush.msra.mxu0 0.0
      %773 = vmatpush.msra.mxu0 0.0
      %774 = vmatpush.msra.mxu0 0.0
      %775 = vmatpush.msra.mxu0 0.0
      %776 = vmatpush.msra.mxu0 0.0
      %777 = vmatpush.msra.mxu0 %v426
      %778 = vmatpush.msra.mxu0 %v425
      %779 = vmatpush.msra.mxu0 %v424
      %780 = vmatpush.msra.mxu0 %v423
      %781 = vmatmul.f32.gmra.mxu0 %v763
      %v782 = vpop.f32.mrf.mxu0
      %v783 = vadd.f32 0.0, %v782
      %784 = vdwg.mxu0
      %s785 = scalar_lea.vmem %s238, 104
      %786 = vst.msk [vmem:[%s785] sm:$0xff] %vm450, %v783
      %787 = vrot.lane.b32.xlu0 %v421, 64
      %v788 = vpop.permute.xlu0 %787
      %v789 = vsel %vm339, %v788, 0
      %791 = vmatpush.msra.mxu0 0.0
      %792 = vmatpush.msra.mxu0 0.0
      %793 = vmatpush.msra.mxu0 0.0
      %794 = vmatpush.msra.mxu0 0.0
      %795 = vmatpush.msra.mxu0 0.0
      %796 = vmatpush.msra.mxu0 0.0
      %797 = vmatpush.msra.mxu0 0.0
      %798 = vmatpush.msra.mxu0 0.0
      %799 = vmatpush.msra.mxu0 0.0
      %800 = vmatpush.msra.mxu0 0.0
      %801 = vmatpush.msra.mxu0 0.0
      %802 = vmatpush.msra.mxu0 0.0
      %803 = vmatpush.msra.mxu0 %v426
      %804 = vmatpush.msra.mxu0 %v425
      %805 = vmatpush.msra.mxu0 %v424
      %806 = vmatpush.msra.mxu0 %v423
      %807 = vmatmul.f32.gmra.mxu0 %v789
      %v808 = vpop.f32.mrf.mxu0
      %v809 = vadd.f32 0.0, %v808
      %810 = vdwg.mxu0
      %s811 = scalar_lea.vmem %s238, 112
      %812 = vst.msk [vmem:[%s811] sm:$0xff] %vm450, %v809
      %813 = vrot.lane.b32.xlu0 %v421, 32
      %v814 = vpop.permute.xlu0 %813
      %v815 = vsel %vm339, %v814, 0
      %817 = vmatpush.msra.mxu0 0.0
      %818 = vmatpush.msra.mxu0 0.0
      %819 = vmatpush.msra.mxu0 0.0
      %820 = vmatpush.msra.mxu0 0.0
      %821 = vmatpush.msra.mxu0 0.0
      %822 = vmatpush.msra.mxu0 0.0
      %823 = vmatpush.msra.mxu0 0.0
      %824 = vmatpush.msra.mxu0 0.0
      %825 = vmatpush.msra.mxu0 0.0
      %826 = vmatpush.msra.mxu0 0.0
      %827 = vmatpush.msra.mxu0 0.0
      %828 = vmatpush.msra.mxu0 0.0
      %829 = vmatpush.msra.mxu0 %v426
      %830 = vmatpush.msra.mxu0 %v425
      %831 = vmatpush.msra.mxu0 %v424
      %832 = vmatpush.msra.mxu0 %v423
      %833 = vmatmul.f32.gmra.mxu0 %v815
      %v834 = vpop.f32.mrf.mxu0
      %v835 = vadd.f32 0.0, %v834
      %836 = vdwg.mxu0
      %s837 = scalar_lea.vmem %s238, 120
      %838 = vst.msk [vmem:[%s837] sm:$0xff] %vm450, %v835
      %s839 = smul.u32 16, %s20
      %p840 = scmp.lt.s32.totalorder %s19, 1
      %s841 = scalar_select %p840, %s19, 1
      %p842 = scmp.lt.s32.totalorder %s839, 15
      %s843 = scalar_select %p842, %s839, 15
      %s844 = smul.addr %s841, 16
      %s845 = sadd.s32 %s843, %s844
      %s846 = smul.addr %s845, 8
      %s847 = scalar_lea.vmem %s4, %s846
      // Predicated region
      $region41: #{_bilinear_pallas.1} parent=35 // pred_check
        %p848 = pneg %p141
      $region42: #{_bilinear_pallas.1} parent=35 // pred_check_branch
        %850 = sbr.rel (%p848) target = $region44
      $region43: #{_bilinear_pallas.1} parent=35 // pred_region
        %s851 = smul.u32 16, %s20
      $region44: #{_bilinear_pallas.1} parent=35 // pred_fallthru
        _
    $region36: #{_bilinear_pallas.1} parent=5 // pred_fallthru
      _
    %p852 = scmp.le.s32.totalorder 2, %s10
    // Predicated region
    $region45: #{_bilinear_pallas.1} parent=5 // pred_check
      %p853 = pneg %p852
    $region46: #{_bilinear_pallas.1} parent=5 // pred_check_branch
      %855 = sbr.rel (%p853) target = $region48
    $region47: #{_bilinear_pallas.1} parent=5 // pred_region
      %s856 = ssub.s32 %s10, 2
      // Predicated region
      $region49: #{_bilinear_pallas.1} parent=47 // pred_check
        %p857 = pneg %p147
      $region50: #{_bilinear_pallas.1} parent=47 // pred_check_branch
        %859 = sbr.rel (%p857) target = $region52
      $region51: #{_bilinear_pallas.1} parent=47 // pred_region
        %s860 = smul.u32 16, %s22
        %p861 = scmp.lt.s32.totalorder %s21, 1
        %s862 = scalar_select %p861, %s21, 1
        %p863 = scmp.lt.s32.totalorder %s860, 15
        %s864 = scalar_select %p863, %s860, 15
        %s865 = smul.addr %s862, 16
        %s866 = sadd.s32 %s864, %s865
        %s867 = smul.addr %s866, 8
        %s868 = scalar_lea.vmem %s4, %s867
      $region52: #{_bilinear_pallas.1} parent=47 // pred_fallthru
        _
    $region48: #{_bilinear_pallas.1} parent=5 // pred_fallthru
      _
  $region6: #{_bilinear_pallas.1} parent=0 // loop_footer
    %s14 = sadd.s32 1, %s10
  $region7: #{_bilinear_pallas.1} parent=0 // loop_footer_branch
    %9 = sbr.rel target = $region3
  $region8: #{_bilinear_pallas.1} parent=0 // loop_exit
    _

</llo_original>
